<compile_context>
chip_gen: v7x
topology: tpu7x:2x2x1
jax: 0.10.0
libtpu: 0.0.40
codegen_flags: <defaults>
</compile_context>

<pallas_src>
import functools

import jax
import jax.numpy as jnp
import numpy as np
from jax.experimental import pallas as pl
from jax.experimental.pallas import tpu as pltpu


def _round_down(x, m):
    return (x // m) * m


def _round_up(x, m):
    return ((x + m - 1) // m) * m


# ---------------------------------------------------------------------------
# Kernel 1: streaming per-row variance (single pass, shifted sum / sum-of-squares).
# grid = (row_blocks, hw_blocks); lane-dense accumulators live in VMEM scratch and
# are reduced + finalized only on the last hw step of each row block.
# ---------------------------------------------------------------------------
def _var_rows_kernel(x_ref, var_ref, sum_ref, sq_ref, shift_ref, *,
                     hw_total, hw_tile, lane, needs_mask):
    h = pl.program_id(1)
    last = pl.num_programs(1) - 1
    rows = sum_ref.shape[0]
    num_chunks = hw_tile // lane

    @pl.when(h == 0)
    def _init():
        sum_ref[...] = jnp.zeros_like(sum_ref)
        sq_ref[...] = jnp.zeros_like(sq_ref)
        # per-row shift (mean of the first chunk): Var(x) == Var(x - shift),
        # but the shifted sums are far less cancellation-prone.
        c0 = x_ref[:, 0:lane].astype(jnp.float32)
        shift_ref[...] = jnp.sum(c0, axis=1, keepdims=True) * (1.0 / lane)

    # hoisted once per grid step (JAX does not CSE broadcasts inside the chunk loop)
    shift = jnp.broadcast_to(shift_ref[...], (rows, lane))

    def accumulate(masked):
        ps = jnp.zeros((rows, lane), jnp.float32)
        pq = jnp.zeros((rows, lane), jnp.float32)
        if masked:
            col0 = jax.lax.broadcasted_iota(jnp.int32, (rows, lane), 1)
        for j in range(num_chunks):
            c = x_ref[:, j * lane:(j + 1) * lane].astype(jnp.float32) - shift
            if masked:
                col = h * hw_tile + j * lane + col0
                c = jnp.where(col < hw_total, c, 0.0)
            ps = ps + c
            pq = pq + c * c
        sum_ref[...] += ps
        sq_ref[...] += pq

    if needs_mask:
        @pl.when(h != last)
        def _body():
            accumulate(False)

        @pl.when(h == last)
        def _tail():
            accumulate(True)
    else:
        accumulate(False)

    @pl.when(h == last)
    def _finalize():
        s = jnp.sum(sum_ref[...], axis=1, keepdims=True)      # (rows, 1)
        ss = jnp.sum(sq_ref[...], axis=1, keepdims=True)
        n = float(hw_total)
        # unbiased variance (torch.var default); inf/nan if H*W == 1, same as torch.
        var_ref[...] = (ss - s * s * (1.0 / n)) * (1.0 / (n - 1.0))


# ---------------------------------------------------------------------------
# Kernel 2: batched C x C channel attention on the (B, C) variance slab.
#   q[b,i,m] = t[b,i]*Wq[m] + bq[m],  k[b,m,j] = t[b,m]*Wk[j] + bk[j]
#   attn[b,i,j] = sum_m q k = t[b,i]*(A[b]*Wk[j] + Sq*bk[j]) + (Cb[b]*Wk[j] + Sb*bk[j])
# so the bmm collapses to VPU broadcasting; only v = t @ Wv^T uses the MXU.
# ---------------------------------------------------------------------------
def _cs_attn_kernel(t_ref, wq_ref, bq_ref, wk_ref, bk_ref, wv_ref, bv_ref,
                    o_ref, *, inv_sqrt_c):
    t = t_ref[...].astype(jnp.float32)                        # (TB, C)
    wq = wq_ref[...]
    bq = bq_ref[...]
    wk = wk_ref[...]
    bk = bk_ref[...]
    bv = bv_ref[...]

    # value projection (the only real matmul), once for the whole batch block
    v = jnp.dot(t, wv_ref[...], preferred_element_type=jnp.float32) + bv   # (TB, C)

    A = jnp.sum(t * wq, axis=1, keepdims=True)                # (TB, 1)
    Cb = jnp.sum(t * bq, axis=1, keepdims=True)               # (TB, 1)
    Sq = jnp.sum(wq, axis=1, keepdims=True)                   # (1, 1)
    Sb = jnp.sum(bq, axis=1, keepdims=True)                   # (1, 1)
    u = (A * wk + Sq * bk) * inv_sqrt_c                       # (TB, C)
    w = (Cb * wk + Sb * bk) * inv_sqrt_c                      # (TB, C)

    # logits[b,i,j] = attn[b,i,j] / sqrt(c); softmax over j; weight by v[b,j]
    logits = t[:, :, None] * u[:, None, :] + w[:, None, :]    # (TB, C, C)
    m = jnp.max(logits, axis=-1, keepdims=True)
    e = jnp.exp(logits - m)
    p = e / jnp.sum(e, axis=-1, keepdims=True)
    out = jnp.sum(p * v[:, None, :], axis=-1)                 # (TB, C)
    o_ref[...] = jax.nn.sigmoid(out).astype(o_ref.dtype)


def _variance_tiles(R, HW, itemsize):
    # dtype-aware sublane packing: f32 -> 8, bf16 -> 16, int8/fp8 -> 32
    sub = max(8, 32 // max(int(itemsize), 1))
    ROW_CAP = 128                                  # keeps (rows,128) f32 partials in vregs
    if R <= sub:
        block_rows = R                             # full extent is always a legal block
    else:
        block_rows = min(ROW_CAP, _round_down(R, sub))
        # v7x megacore: make sure the "parallel" row axis has >= 2 blocks
        if R >= 2 * sub and pl.cdiv(R, block_rows) < 2:
            block_rows = _round_up(pl.cdiv(R, 2), sub)

    LANE = 128
    ELEM_CAP = 2 * 1024 * 1024                     # <= ~2M elements per tile
    BYTE_CAP = 8 * 1024 * 1024                     # <= ~8 MiB per pipelined input buffer
    COL_CAP = 16384
    if HW <= LANE:
        hw_tile = HW
        lane = HW
    else:
        lane = LANE
        hw_tile = min(
            _round_down(HW, LANE),
            _round_down(max(LANE, ELEM_CAP // block_rows), LANE),
            _round_down(max(LANE, BYTE_CAP // (block_rows * int(itemsize))), LANE),
            COL_CAP)
        hw_tile = max(hw_tile, LANE)
    return block_rows, hw_tile, lane


def cs_attention(x, params):
    B, C, H, W = x.shape
    HW = H * W
    R = B * C
    wq, bq, wk, bk, wv, bv = params

    xf = x.reshape(R, HW)                          # free reshape for contiguous NCHW
    itemsize = jnp.dtype(x.dtype).itemsize

    block_rows, hw_tile, lane = _variance_tiles(R, HW, itemsize)
    grid_r = pl.cdiv(R, block_rows)
    grid_h = pl.cdiv(HW, hw_tile)
    needs_mask = (HW % hw_tile) != 0

    var = pl.pallas_call(
        functools.partial(_var_rows_kernel, hw_total=HW, hw_tile=hw_tile,
                          lane=lane, needs_mask=needs_mask),
        out_shape=jax.ShapeDtypeStruct((R, 1), jnp.float32),
        grid_spec=pltpu.PrefetchScalarGridSpec(
            num_scalar_prefetch=0,
            grid=(grid_r, grid_h),
            in_specs=[pl.BlockSpec((block_rows, hw_tile), lambda r, h: (r, h))],
            out_specs=pl.BlockSpec((block_rows, 1), lambda r, h: (r, 0)),
            scratch_shapes=[pltpu.VMEM((block_rows, lane), jnp.float32),   # sum
                            pltpu.VMEM((block_rows, lane), jnp.float32),   # sum of squares
                            pltpu.VMEM((block_rows, 1), jnp.float32)],     # per-row shift
        ),
        compiler_params=pltpu.CompilerParams(
            dimension_semantics=("parallel", "arbitrary"),
            vmem_limit_bytes=48 * 1024 * 1024,
        ),
        cost_estimate=pl.CostEstimate(
            flops=4 * R * HW,
            transcendentals=0,
            bytes_accessed=R * HW * int(itemsize) + R * 4,
        ),
    )(xf)

    t2 = var.reshape(B, C)                         # free reshape

    # one-time weight relayouts in XLA; the kernel never transposes anything.
    f32 = jnp.float32
    wq_row = wq.reshape(1, C).astype(f32)          # w_qs.weight[:, 0] as a row
    wk_row = wk.reshape(1, C).astype(f32)          # w_ks.weight[:, 0] as a row
    wv_t = wv.T.astype(f32)                        # so v = t @ Wv^T
    bq_row = bq.reshape(1, C).astype(f32)
    bk_row = bk.reshape(1, C).astype(f32)
    bv_row = bv.reshape(1, C).astype(f32)

    TB = B if B <= 256 else 256
    grid_b = pl.cdiv(B, TB)

    out = pl.pallas_call(
        functools.partial(_cs_attn_kernel,
                          inv_sqrt_c=1.0 / float(np.sqrt(float(C)))),
        out_shape=jax.ShapeDtypeStruct((B, C), x.dtype),
        grid_spec=pltpu.PrefetchScalarGridSpec(
            num_scalar_prefetch=0,
            grid=(grid_b,),
            in_specs=[
                pl.BlockSpec((TB, C), lambda b: (b, 0)),   # t (per-channel variance)
                pl.BlockSpec((1, C), lambda b: (0, 0)),    # Wq row
                pl.BlockSpec((1, C), lambda b: (0, 0)),    # bq
                pl.BlockSpec((1, C), lambda b: (0, 0)),    # Wk row
                pl.BlockSpec((1, C), lambda b: (0, 0)),    # bk
                pl.BlockSpec((C, C), lambda b: (0, 0)),    # Wv^T
                pl.BlockSpec((1, C), lambda b: (0, 0)),    # bv
            ],
            out_specs=pl.BlockSpec((TB, C), lambda b: (b, 0)),
        ),
        compiler_params=pltpu.CompilerParams(
            dimension_semantics=("parallel",)),
    )(t2, wq_row, bq_row, wk_row, bk_row, wv_t, bv_row)

    return out.reshape(B, C, 1, 1)


def init_params(key, C):
    # deterministic init mimicking nn.Linear defaults: U(-1/sqrt(fan_in), 1/sqrt(fan_in))
    ks = jax.random.split(key, 6)

    def u(k, shape, fan_in):
        bound = 1.0 / float(np.sqrt(fan_in))
        return jax.random.uniform(k, shape, jnp.float32, -bound, bound)

    wq = u(ks[0], (C, 1), 1)   # w_qs.weight (out=C, in=1)
    bq = u(ks[1], (1, C), 1)   # w_qs.bias
    wk = u(ks[2], (C, 1), 1)   # w_ks.weight
    bk = u(ks[3], (1, C), 1)   # w_ks.bias
    wv = u(ks[4], (C, C), C)   # w_vs.weight (out=C, in=C)
    bv = u(ks[5], (1, C), C)   # w_vs.bias
    return (wq, bq, wk, bk, wv, bv)


def reference(x, params):
    # pure-JAX reference of the PyTorch forward (for validation only)
    wq, bq, wk, bk, wv, bv = params
    B, C, H, W = x.shape
    t = jnp.var(x.reshape(B, C, -1).astype(jnp.float32), axis=-1, ddof=1)   # (B, C)
    q = t[:, :, None] * wq[:, 0][None, None, :] + bq[0][None, None, :]      # (B, C, C)
    k = t[:, :, None] * wk[:, 0][None, None, :] + bk[0][None, None, :]      # (B, C, C)
    v = t @ wv.T + bv[0][None, :]                                           # (B, C)
    attn = jnp.einsum('bij,bjk->bik', q, k) / np.sqrt(float(C))
    attn = jax.nn.softmax(attn, axis=-1)
    out = jnp.einsum('bij,bj->bi', attn, v)
    out = jax.nn.sigmoid(out)
    return out.reshape(B, C, 1, 1)


if __name__ == "__main__":
    key = jax.random.PRNGKey(0)
    kx, kp = jax.random.split(key)
    B, C, H, W = 2, 4, 16, 16
    x = jax.random.normal(kx, (B, C, H, W), jnp.float32)
    params = init_params(kp, C)

    out = cs_attention(x, params)
    out = jax.block_until_ready(out)
    assert out.shape == (B, C, 1, 1)

    ref = reference(x, params)
    max_err = float(jnp.max(jnp.abs(out.astype(jnp.float32) - ref)))
    assert max_err < 1e-5, f"mismatch vs reference: {max_err}"
    print("KERNEL_OK")
</pallas_src>

<mosaic_0001>
module attributes {stable_mosaic.version = 11 : i64} {
  func.func @_var_rows_kernel(%arg0: i32, %arg1: i32, %arg2: memref<8x256xf32, #tpu.memory_space<vmem>>, %arg3: memref<8x1xf32, #tpu.memory_space<vmem>>, %arg4: memref<8x128xf32, #tpu.memory_space<vmem>>, %arg5: memref<8x128xf32, #tpu.memory_space<vmem>>, %arg6: memref<8x1xf32, #tpu.memory_space<vmem>>) attributes {dimension_semantics = [#tpu.dimension_semantics<parallel>, #tpu.dimension_semantics<arbitrary>], iteration_bounds = array<i64: 1, 1>, scalar_prefetch = 0 : i64, scratch_operands = 3 : i64, tpu.core_type = #tpu.core_type<tc>, window_params = [{transform_indices = @transform_0, window_bounds = array<i64: 8, 256>}, {transform_indices = @transform_1, window_bounds = array<i64: 8, 1>}]} {
    %c0_i32 = arith.constant 0 : i32
    %0 = arith.cmpi eq, %arg1, %c0_i32 : i32
    %1 = arith.extui %0 : i1 to i32
    %c0_i32_0 = arith.constant 0 : i32
    %2 = arith.cmpi ne, %1, %c0_i32_0 : i32
    scf.if %2 {
      %cst_16 = arith.constant 0.000000e+00 : f32
      %27 = vector.broadcast %cst_16 : f32 to vector<8x128xf32>
      %c0_17 = arith.constant 0 : index
      %c0_18 = arith.constant 0 : index
      %28 = vector.load %arg4[%c0_17, %c0_18] : memref<8x128xf32, #tpu.memory_space<vmem>>, vector<8x128xf32>
      tpu.vector_store %arg4[%c0_17, %c0_18], %27 {strides = array<i32>} : memref<8x128xf32, #tpu.memory_space<vmem>>, vector<8x128xf32>,
      %cst_19 = arith.constant 0.000000e+00 : f32
      %29 = vector.broadcast %cst_19 : f32 to vector<8x128xf32>
      %c0_20 = arith.constant 0 : index
      %c0_21 = arith.constant 0 : index
      %30 = vector.load %arg5[%c0_20, %c0_21] : memref<8x128xf32, #tpu.memory_space<vmem>>, vector<8x128xf32>
      tpu.vector_store %arg5[%c0_20, %c0_21], %29 {strides = array<i32>} : memref<8x128xf32, #tpu.memory_space<vmem>>, vector<8x128xf32>,
      %c0_22 = arith.constant 0 : index
      %c0_23 = arith.constant 0 : index
      %31 = vector.load %arg2[%c0_22, %c0_23] : memref<8x256xf32, #tpu.memory_space<vmem>>, vector<8x128xf32>
      %cst_24 = arith.constant dense<0.000000e+00> : vector<8xf32>
      %32 = vector.multi_reduction <add>, %31, %cst_24 [1] : vector<8x128xf32> to vector<8xf32>
      %33 = vector.shape_cast %32 : vector<8xf32> to vector<8x1xf32>
      %cst_25 = arith.constant 7.812500e-03 : f32
      %34 = vector.broadcast %cst_25 : f32 to vector<8x1xf32>
      %35 = arith.mulf %33, %34 : vector<8x1xf32>
      %c0_26 = arith.constant 0 : index
      %c0_27 = arith.constant 0 : index
      %36 = vector.load %arg6[%c0_26, %c0_27] : memref<8x1xf32, #tpu.memory_space<vmem>>, vector<8x1xf32>
      tpu.vector_store %arg6[%c0_26, %c0_27], %35 {strides = array<i32>} : memref<8x1xf32, #tpu.memory_space<vmem>>, vector<8x1xf32>,
    } else {
    }
    %c0 = arith.constant 0 : index
    %c0_1 = arith.constant 0 : index
    %3 = vector.load %arg6[%c0, %c0_1] : memref<8x1xf32, #tpu.memory_space<vmem>>, vector<8x1xf32>
    %4 = vector.shape_cast %3 : vector<8x1xf32> to vector<8x1xf32>
    %5 = vector.broadcast %4 : vector<8x1xf32> to vector<8x128xf32>
    %cst = arith.constant 0.000000e+00 : f32
    %6 = vector.broadcast %cst : f32 to vector<8x128xf32>
    %cst_2 = arith.constant 0.000000e+00 : f32
    %7 = vector.broadcast %cst_2 : f32 to vector<8x128xf32>
    %c0_3 = arith.constant 0 : index
    %c0_4 = arith.constant 0 : index
    %8 = vector.load %arg2[%c0_3, %c0_4] : memref<8x256xf32, #tpu.memory_space<vmem>>, vector<8x128xf32>
    %9 = arith.subf %8, %5 : vector<8x128xf32>
    %10 = arith.addf %6, %9 : vector<8x128xf32>
    %11 = arith.mulf %9, %9 : vector<8x128xf32>
    %12 = arith.addf %7, %11 : vector<8x128xf32>
    %c0_5 = arith.constant 0 : index
    %c128 = arith.constant 128 : index
    %13 = vector.load %arg2[%c0_5, %c128] : memref<8x256xf32, #tpu.memory_space<vmem>>, vector<8x128xf32>
    %14 = arith.subf %13, %5 : vector<8x128xf32>
    %15 = arith.addf %10, %14 : vector<8x128xf32>
    %16 = arith.mulf %14, %14 : vector<8x128xf32>
    %17 = arith.addf %12, %16 : vector<8x128xf32>
    %c0_6 = arith.constant 0 : index
    %c0_7 = arith.constant 0 : index
    %18 = vector.load %arg4[%c0_6, %c0_7] : memref<8x128xf32, #tpu.memory_space<vmem>>, vector<8x128xf32>
    %19 = arith.addf %18, %15 : vector<8x128xf32>
    %c0_8 = arith.constant 0 : index
    %c0_9 = arith.constant 0 : index
    %20 = vector.load %arg4[%c0_8, %c0_9] : memref<8x128xf32, #tpu.memory_space<vmem>>, vector<8x128xf32>
    tpu.vector_store %arg4[%c0_8, %c0_9], %19 {strides = array<i32>} : memref<8x128xf32, #tpu.memory_space<vmem>>, vector<8x128xf32>,
    %c0_10 = arith.constant 0 : index
    %c0_11 = arith.constant 0 : index
    %21 = vector.load %arg5[%c0_10, %c0_11] : memref<8x128xf32, #tpu.memory_space<vmem>>, vector<8x128xf32>
    %22 = arith.addf %21, %17 : vector<8x128xf32>
    %c0_12 = arith.constant 0 : index
    %c0_13 = arith.constant 0 : index
    %23 = vector.load %arg5[%c0_12, %c0_13] : memref<8x128xf32, #tpu.memory_space<vmem>>, vector<8x128xf32>
    tpu.vector_store %arg5[%c0_12, %c0_13], %22 {strides = array<i32>} : memref<8x128xf32, #tpu.memory_space<vmem>>, vector<8x128xf32>,
    %c0_i32_14 = arith.constant 0 : i32
    %24 = arith.cmpi eq, %arg1, %c0_i32_14 : i32
    %25 = arith.extui %24 : i1 to i32
    %c0_i32_15 = arith.constant 0 : i32
    %26 = arith.cmpi ne, %25, %c0_i32_15 : i32
    scf.if %26 {
      %c0_16 = arith.constant 0 : index
      %c0_17 = arith.constant 0 : index
      %27 = vector.load %arg4[%c0_16, %c0_17] : memref<8x128xf32, #tpu.memory_space<vmem>>, vector<8x128xf32>
      %cst_18 = arith.constant dense<0.000000e+00> : vector<8xf32>
      %28 = vector.multi_reduction <add>, %27, %cst_18 [1] : vector<8x128xf32> to vector<8xf32>
      %29 = vector.shape_cast %28 : vector<8xf32> to vector<8x1xf32>
      %c0_19 = arith.constant 0 : index
      %c0_20 = arith.constant 0 : index
      %30 = vector.load %arg5[%c0_19, %c0_20] : memref<8x128xf32, #tpu.memory_space<vmem>>, vector<8x128xf32>
      %cst_21 = arith.constant dense<0.000000e+00> : vector<8xf32>
      %31 = vector.multi_reduction <add>, %30, %cst_21 [1] : vector<8x128xf32> to vector<8xf32>
      %32 = vector.shape_cast %31 : vector<8xf32> to vector<8x1xf32>
      %33 = arith.mulf %29, %29 : vector<8x1xf32>
      %cst_22 = arith.constant 3.906250e-03 : f32
      %34 = vector.broadcast %cst_22 : f32 to vector<8x1xf32>
      %35 = arith.mulf %33, %34 : vector<8x1xf32>
      %36 = arith.subf %32, %35 : vector<8x1xf32>
      %cst_23 = arith.constant 0.00392156886 : f32
      %37 = vector.broadcast %cst_23 : f32 to vector<8x1xf32>
      %38 = arith.mulf %36, %37 : vector<8x1xf32>
      %c0_24 = arith.constant 0 : index
      %c0_25 = arith.constant 0 : index
      %39 = vector.load %arg3[%c0_24, %c0_25] : memref<8x1xf32, #tpu.memory_space<vmem>>, vector<8x1xf32>
      tpu.vector_store %arg3[%c0_24, %c0_25], %38 {strides = array<i32>} : memref<8x1xf32, #tpu.memory_space<vmem>>, vector<8x1xf32>,
    } else {
    }
    return
  }
  func.func @transform_0(%arg0: i32, %arg1: i32) -> (i32, i32) {
    %c0_i32 = arith.constant 0 : i32
    return %arg0, %arg1 : i32, i32
  }
  func.func @transform_1(%arg0: i32, %arg1: i32) -> (i32, i32) {
    %c0_i32 = arith.constant 0 : i32
    %c0_i32_0 = arith.constant 0 : i32
    return %arg0, %c0_i32 : i32, i32
  }
}

</mosaic_0001>

<llo_original>
// kernel: tpu_custom_call.1
$region0: #{tpu_custom_call.1}
  #allocation0 [shape = 'u32[]', space=smem, size = 0x4, offset = 0x4, fixed_abs, tag = 'smem constant byte address 0x4 - core index']
  #allocation1 [shape = 'u32[144,128]{1,0:T(1,128)}', space=vmem, size = 0x12000, scoped, tag = 'internal scratch']
  #allocation2 [shape = 'f32[8,128]{1,0:T(8,128)}', space=vmem, size = 0x1000, scoped, tag = 'scratch operand']
  #allocation3 [shape = 'f32[8,128]{1,0:T(8,128)}', space=vmem, size = 0x1000, scoped, tag = 'scratch operand']
  #allocation4 [shape = 'f32[8,1]{1,0:T(8,128)}', space=vmem, size = 0x1000, scoped, tag = 'scratch operand']
  %s0 = inlined_call_operand.hbm [shape: f32[8,256], index: 0, kind: input, shape index: {}]
  %s1 = inlined_call_operand.vmem [shape: f32[8,1], index: 1, kind: output, shape index: {}]
  %s2 = sld [smem:[#allocation0]]
  $region26: #{tpu_custom_call.1} parent=0
    _
  %s4 = ssub.s32 1, %s2
  %s5 = scalar_select 0, %s4, %s2
  $region1: #{tpu_custom_call.1} parent=0
    #allocation5 [shape = 'u8[8192]{0}', space=vmem, size = 0x2000, scoped, tag = 'input window, operand 0, single buffered']
    #allocation6 [shape = 's32[1]{0}', space=sflag, size = 0x4, scoped, tag = 'scoped memory for tpu_custom_call.1']
    %6 = vsyncpa [#allocation6], 0
    // Predicated region
    $region2: #{tpu_custom_call.1} parent=1 // pred_check
      _
    $region3: #{tpu_custom_call.1} parent=1 // pred_check_branch
      %8 = sbr.rel (0) target = $region5
    $region4: #{tpu_custom_call.1} parent=1 // pred_region
      %s10 = ssub.s32 256, 256
      %11 = vsyncadd [#allocation6], %s10
      %s13 = sshll.u32 [#allocation5], 4
      %s14 = int_to_ptr.vmem [resolvable:$true] %s13
      %16 = dma.hbm_to_vmem [thread:$0]  %s0, 256, %s14, [#allocation6]
    $region5: #{tpu_custom_call.1} parent=1 // pred_fallthru
      _
    // Predicated region
    $region6: #{tpu_custom_call.1} parent=1 // pred_check
      _
    $region7: #{tpu_custom_call.1} parent=1 // pred_check_branch
      %18 = sbr.rel (0) target = $region9
    $region8: #{tpu_custom_call.1} parent=1 // pred_region
      %19 = dma.done [#allocation6], 256
    $region9: #{tpu_custom_call.1} parent=1 // pred_fallthru
      _
    %p20 = scmp.eq.s32.totalorder 0, 0
    // Predicated region
    $region10: #{tpu_custom_call.1} parent=1 // pred_check
      %p21 = pneg %p20
    $region11: #{tpu_custom_call.1} parent=1 // pred_check_branch
      %23 = sbr.rel (%p21) target = $region13
    $region12: #{tpu_custom_call.1} parent=1 // pred_region
      %24 = vst [vmem:[#allocation2] sm:$0xff] 0.0
      %25 = vst [vmem:[#allocation3] sm:$0xff] 0.0
      %v26 = vld [vmem:[#allocation5] sm:$0xff]
      %27 = vadd.xlane.f32.xlu0 %v26
      %v28 = vpop.xlane.xlu0 %27
      %v29 = vmul.f32 %v28, 0.0078125
      %vm30 = vcmask 7168
      %31 = vst.msk [vmem:[#allocation4] sm:$0xff] %vm30, %v29
    $region13: #{tpu_custom_call.1} parent=1 // pred_fallthru
      _
    %v32 = vld [vmem:[#allocation4] sm:$0xff]
    %34 = vset.pattern.permute.xlu0 0
    %35 = vperm.xlu0 %34, %v32
    %v36 = vpop.permute.xlu0 %35
    %v38 = vld [vmem:[#allocation5] sm:$0xff]
    %v39 = vsub.f32 %v38, %v36
    %v40 = vadd.f32 %v39, 0.0
    %v41 = vmul.f32 %v39, %v39
    %v42 = vadd.f32 %v41, 0.0
    %v43 = vld [vmem:[#allocation5 + $0x8] sm:$0xff]
    %v44 = vsub.f32 %v43, %v36
    %v45 = vadd.f32 %v40, %v44
    %v46 = vmul.f32 %v44, %v44
    %v47 = vadd.f32 %v42, %v46
    %v48 = vld [vmem:[#allocation2] sm:$0xff]
    %v49 = vadd.f32 %v48, %v45
    %50 = vst [vmem:[#allocation2] sm:$0xff] %v49
    %v51 = vld [vmem:[#allocation3] sm:$0xff]
    %v52 = vadd.f32 %v51, %v47
    %53 = vst [vmem:[#allocation3] sm:$0xff] %v52
    // Predicated region
    $region14: #{tpu_custom_call.1} parent=1 // pred_check
      %p54 = pneg %p20
    $region15: #{tpu_custom_call.1} parent=1 // pred_check_branch
      %56 = sbr.rel (%p54) target = $region17
    $region16: #{tpu_custom_call.1} parent=1 // pred_region
      %v57 = vld [vmem:[#allocation2] sm:$0xff]
      %58 = vadd.xlane.f32.xlu0 %v57
      %v59 = vpop.xlane.xlu0 %58
      %v60 = vld [vmem:[#allocation3] sm:$0xff]
      %61 = vadd.xlane.f32.xlu0 %v60
      %v62 = vpop.xlane.xlu0 %61
      %v63 = vmul.f32 %v59, %v59
      %v64 = vmul.f32 %v63, 0.00390625
      %v65 = vsub.f32 %v62, %v64
      %v66 = vmul.f32 %v65, 0.003921569
      %vm67 = vcmask 7168
      %68 = vst.msk [vmem:[%s1] sm:$0xff] %vm67, %v66
    $region17: #{tpu_custom_call.1} parent=1 // pred_fallthru
      _
    // Predicated region
    $region18: #{tpu_custom_call.1} parent=1 // pred_check
      _
    $region19: #{tpu_custom_call.1} parent=1 // pred_check_branch
      %70 = sbr.rel (0) target = $region21
    $region20: #{tpu_custom_call.1} parent=1 // pred_region
      _
    $region21: #{tpu_custom_call.1} parent=1 // pred_fallthru
      _
    // Predicated region
    $region22: #{tpu_custom_call.1} parent=1 // pred_check
      _
    $region23: #{tpu_custom_call.1} parent=1 // pred_check_branch
      %72 = sbr.rel (0) target = $region25
    $region24: #{tpu_custom_call.1} parent=1 // pred_region
      _
    $region25: #{tpu_custom_call.1} parent=1 // pred_fallthru
      _
    %73 = vsyncpa [#allocation6], 1

</llo_original>
